<compile_context>
chip_gen: v7x
topology: tpu7x:2x2x1
jax: 0.10.0
libtpu: 0.0.40
codegen_flags: <defaults>
</compile_context>

<pallas_src>
import jax
import jax.numpy as jnp
from jax.experimental import pallas as pl
from jax.experimental.pallas import tpu as pltpu

LN_EPS = 1e-5
_SQRT_2_OVER_PI = 0.7978845608028654


# ----------------- shared math helpers (used by the kernel and the JAX refs) -----------------

def _layernorm(x, gamma, beta):
    mu = jnp.mean(x, axis=-1, keepdims=True)
    xc = x - mu
    var = jnp.mean(xc * xc, axis=-1, keepdims=True)
    return xc * jax.lax.rsqrt(var + LN_EPS) * gamma + beta


def _softmax_seq(y):
    # softmax over dim=-2 (the sequence axis), as in FNetBlock.
    m = jnp.max(y, axis=-2, keepdims=True)
    e = jnp.exp(y - m)
    return e / jnp.sum(e, axis=-2, keepdims=True)


def _gelu_tanh(x):
    # TODO(synk): nn.GELU() defaults to the exact erf form; tanh approximation
    # (|delta| < 1e-3) is used here for guaranteed Mosaic lowering.
    return 0.5 * x * (1.0 + jnp.tanh(_SQRT_2_OVER_PI * (x + 0.044715 * x * x * x)))


def _dft_mats(n, dtype=jnp.float32):
    """C[k,m] = cos(2*pi*k*m/n), S[k,m] = sin(2*pi*k*m/n) (phase reduced mod n exactly)."""
    k = jnp.arange(n, dtype=jnp.int32)
    idx = (k[:, None] * k[None, :]) % n
    ang = (2.0 * jnp.pi / n) * idx.astype(jnp.float32)
    return jnp.cos(ang).astype(dtype), jnp.sin(ang).astype(dtype)


# ----------------------------------- fused layer kernel --------------------------------------

def _fnet_layer_kernel(x_ref, g1_ref, be1_ref, csk_ref, ssk_ref, cd_ref, sd_ref,
                       g2_ref, be2_ref, w1_ref, fb1_ref, w2_ref, fb2_ref,
                       out_ref, vis_ref):
    tb, s, d = x_ref.shape
    r = tb * s
    mxu_dt = w1_ref.dtype                      # bf16 (default) or f32

    x = x_ref[...].astype(jnp.float32)         # (TB, S, D)

    # --- PreNorm-1 (LayerNorm over d_model) then FNetBlock softmax over seq (dim=-2) ---
    y = _layernorm(x, g1_ref[...], be1_ref[...])
    visual = _softmax_seq(y)
    vis_ref[...] = visual.astype(vis_ref.dtype)

    # --- FNetBlock: Re(FFT2(visual)) = C_S v C_D - S_S v S_D as MXU matmuls.
    #     The per-batch seq-side DFT is folded into block-diagonal kron(I_TB, C_S) so
    #     every matmul is a plain 2-D dot over the flattened (TB*S, D) rows (big M dim).
    v2 = visual.reshape(r, d).astype(mxu_dt)
    lc = jnp.dot(csk_ref[...], v2, preferred_element_type=jnp.float32)
    ls = jnp.dot(ssk_ref[...], v2, preferred_element_type=jnp.float32)
    mix = (jnp.dot(lc.astype(mxu_dt), cd_ref[...], preferred_element_type=jnp.float32)
           - jnp.dot(ls.astype(mxu_dt), sd_ref[...], preferred_element_type=jnp.float32))

    x1 = mix + x.reshape(r, d)                 # residual 1 (f32)

    # --- PreNorm-2 + FeedForward: Linear(D,H) -> GELU -> Linear(H,D)  (Dropout(p=0) == id) ---
    z = _layernorm(x1, g2_ref[...], be2_ref[...])
    h = jnp.dot(z.astype(mxu_dt), w1_ref[...],
                preferred_element_type=jnp.float32) + fb1_ref[...]
    h = _gelu_tanh(h)
    ff = jnp.dot(h.astype(mxu_dt), w2_ref[...],
                 preferred_element_type=jnp.float32) + fb2_ref[...]

    out_ref[...] = (ff + x1).reshape(tb, s, d).astype(out_ref.dtype)   # residual 2


def _fnet_layer_call(x, g1, be1, g2, be2, w1t, fb1, w2t, fb2, csk, ssk, cd, sd,
                     *, batch_tile):
    B, S, D = x.shape
    H = w1t.shape[1]
    R = batch_tile * S
    assert csk.shape == (R, R)

    row_spec = pl.BlockSpec((batch_tile, S, D), lambda i: (i, 0, 0))

    def const_spec(shape):
        # Constant index_map -> block stays resident across the grid (no re-DMA).
        return pl.BlockSpec(shape, lambda i: (0, 0))

    out, visual = pl.pallas_call(
        _fnet_layer_kernel,
        out_shape=(jax.ShapeDtypeStruct((B, S, D), x.dtype),        # layer output
                   jax.ShapeDtypeStruct((B, S, D), jnp.float32)),   # `visual`
        grid_spec=pltpu.PrefetchScalarGridSpec(
            num_scalar_prefetch=0,
            grid=(pl.cdiv(B, batch_tile),),     # ragged tail handled by Pallas padding
            in_specs=[
                row_spec,                                   # x tile
                const_spec((1, D)), const_spec((1, D)),     # LN1 gamma / beta
                const_spec((R, R)), const_spec((R, R)),     # kron(I, C_S), kron(I, S_S)
                const_spec((D, D)), const_spec((D, D)),     # C_D, S_D
                const_spec((1, D)), const_spec((1, D)),     # LN2 gamma / beta
                const_spec((D, H)), const_spec((1, H)),     # W1^T, b1
                const_spec((H, D)), const_spec((1, D)),     # W2^T, b2
            ],
            out_specs=(row_spec, row_spec),
        ),
        compiler_params=pltpu.CompilerParams(
            dimension_semantics=("parallel",),   # batch axis independent (megacore on v7x)
        ),
    )(x,
      g1.reshape(1, D), be1.reshape(1, D),
      csk, ssk, cd, sd,
      g2.reshape(1, D), be2.reshape(1, D),
      w1t, fb1.reshape(1, H), w2t, fb2.reshape(1, D))
    return out, visual


def fnet_forward(x, layers, *, mxu_dtype=jnp.bfloat16, batch_tile=None):
    """Full FNet forward.  `layers` is a list of f32 tuples
    (ln1_gamma, ln1_beta, ln2_gamma, ln2_beta, w1_t[D,H], b1[H], w2_t[H,D], b2[D]).
    Returns (x_out, visual_of_last_layer)."""
    B, S, D = x.shape
    if batch_tile is None:
        # Target >= ~256 flattened (batch*seq) matmul rows per grid step: saturates the
        # MXU M dimension and amortizes the ~0.35us per-grid-step pipeline overhead.
        batch_tile = max(1, min(B, pl.cdiv(256, S)))

    cs, sn = _dft_mats(S, mxu_dtype)
    cd, sd = _dft_mats(D, mxu_dtype)
    eye = jnp.eye(batch_tile, dtype=mxu_dtype)
    csk = jnp.kron(eye, cs)                     # block-diagonal per-batch seq-side DFT
    ssk = jnp.kron(eye, sn)

    visual = None
    for (g1, be1, g2, be2, w1t, fb1, w2t, fb2) in layers:
        x, visual = _fnet_layer_call(
            x, g1, be1, g2, be2,
            w1t.astype(mxu_dtype), fb1, w2t.astype(mxu_dtype), fb2,
            csk, ssk, cd, sd, batch_tile=batch_tile)
    return x, visual


# -------------------------------------- references -------------------------------------------

def fnet_ref(x, layers):
    """Faithful f32 JAX reference (uses jnp.fft.fft2 for the Fourier mixing)."""
    visual = None
    for (g1, be1, g2, be2, w1t, fb1, w2t, fb2) in layers:
        y = _layernorm(x, g1, be1)
        visual = _softmax_seq(y)
        mix = jnp.fft.fft2(visual, axes=(-2, -1)).real
        x = mix + x
        z = _layernorm(x, g2, be2)
        h = _gelu_tanh(jnp.dot(z, w1t, precision='highest') + fb1)
        x = jnp.dot(h, w2t, precision='highest') + fb2 + x
    return x, visual


def fnet_matched_ref(x, layers, *, mxu_dtype=jnp.bfloat16):
    """Pure-JAX emulation of the kernel's numerics (DFT-as-matmul, bf16 MXU inputs,
    f32 accumulation) for a tight check of the kernel wiring."""
    B, S, D = x.shape
    cs, sn = _dft_mats(S, mxu_dtype)
    cd, sd = _dft_mats(D, mxu_dtype)
    f32 = jnp.float32
    visual = None
    for (g1, be1, g2, be2, w1t, fb1, w2t, fb2) in layers:
        y = _layernorm(x, g1, be1)
        visual = _softmax_seq(y)
        v = visual.astype(mxu_dtype)
        lc = jnp.einsum('ts,bsd->btd', cs, v, preferred_element_type=f32)
        ls = jnp.einsum('ts,bsd->btd', sn, v, preferred_element_type=f32)
        mix = (jnp.einsum('bsd,de->bse', lc.astype(mxu_dtype), cd, preferred_element_type=f32)
               - jnp.einsum('bsd,de->bse', ls.astype(mxu_dtype), sd, preferred_element_type=f32))
        x = mix + x
        z = _layernorm(x, g2, be2)
        h = jnp.einsum('bsd,dh->bsh', z.astype(mxu_dtype), w1t.astype(mxu_dtype),
                       preferred_element_type=f32) + fb1
        h = _gelu_tanh(h)
        ff = jnp.einsum('bsh,hd->bsd', h.astype(mxu_dtype), w2t.astype(mxu_dtype),
                        preferred_element_type=f32) + fb2
        x = ff + x
    return x, visual


# ------------------------------------------ test ---------------------------------------------

if __name__ == "__main__":
    key = jax.random.PRNGKey(0)
    # batch, input_len (seq), d_model, mlp_dim, depth — small but lane-dense (D = 128).
    B, S, D, H, DEPTH = 2, 8, 128, 256, 2

    keys = jax.random.split(key, 1 + 8 * DEPTH)
    x = jax.random.normal(keys[0], (B, S, D), dtype=jnp.float32)

    layers = []
    for l in range(DEPTH):
        k = keys[1 + 8 * l: 1 + 8 * (l + 1)]
        layers.append((
            1.0 + 0.02 * jax.random.normal(k[0], (D,), jnp.float32),   # LN1 gamma
            0.02 * jax.random.normal(k[1], (D,), jnp.float32),         # LN1 beta
            1.0 + 0.02 * jax.random.normal(k[2], (D,), jnp.float32),   # LN2 gamma
            0.02 * jax.random.normal(k[3], (D,), jnp.float32),         # LN2 beta
            0.1 * jax.random.normal(k[4], (D, H), jnp.float32),        # W1^T (d_model -> mlp)
            0.02 * jax.random.normal(k[5], (H,), jnp.float32),         # b1
            0.1 * jax.random.normal(k[6], (H, D), jnp.float32),        # W2^T (mlp -> d_model)
            0.02 * jax.random.normal(k[7], (D,), jnp.float32),         # b2
        ))

    # --- run the fused Pallas FNet forward (bf16 MXU inputs, f32 accumulation) ---
    out, visual = fnet_forward(x, layers, mxu_dtype=jnp.bfloat16)
    out, visual = jax.block_until_ready((out, visual))
    assert out.shape == (B, S, D) and visual.shape == (B, S, D)

    # --- check 1: DFT-as-matmul identity vs jnp.fft.fft2 (pure JAX, f32) ---
    csf, snf = _dft_mats(S)
    cdf, sdf = _dft_mats(D)
    vtest = _softmax_seq(jax.random.normal(jax.random.PRNGKey(1), (B, S, D), jnp.float32))
    lcf = jnp.einsum('ts,bsd->btd', csf, vtest, precision='highest')
    lsf = jnp.einsum('ts,bsd->btd', snf, vtest, precision='highest')
    mix_mm = (jnp.einsum('bsd,de->bse', lcf, cdf, precision='highest')
              - jnp.einsum('bsd,de->bse', lsf, sdf, precision='highest'))
    mix_fft = jnp.fft.fft2(vtest, axes=(-2, -1)).real
    assert jnp.allclose(mix_mm, mix_fft, atol=2e-3, rtol=2e-3), "DFT-as-matmul identity failed"

    # --- check 2: kernel vs numerics-matched JAX emulation (tight) ---
    m_out, m_vis = fnet_matched_ref(x, layers, mxu_dtype=jnp.bfloat16)
    assert jnp.allclose(out, m_out, atol=1e-2, rtol=1e-2), "kernel != matched reference"
    assert jnp.allclose(visual, m_vis, atol=2e-3, rtol=2e-3), "visual != matched reference"

    # --- check 3: end-to-end vs faithful f32 FFT reference (bf16-level agreement) ---
    f_out, f_vis = fnet_ref(x, layers)
    rel = jnp.linalg.norm(out - f_out) / jnp.linalg.norm(f_out)
    assert float(rel) < 3e-2, f"relative error vs f32 FFT reference too large: {float(rel)}"
    assert jnp.allclose(visual, f_vis, atol=3e-2, rtol=3e-2), "visual far from f32 reference"

    print("KERNEL_OK")
</pallas_src>

<mosaic_0001>
module attributes {stable_mosaic.version = 11 : i64} {
  func.func @_fnet_layer_kernel(%arg0: i32, %arg1: memref<2x8x128xf32, #tpu.memory_space<vmem>>, %arg2: memref<1x128xf32, #tpu.memory_space<vmem>>, %arg3: memref<1x128xf32, #tpu.memory_space<vmem>>, %arg4: memref<16x16xbf16, #tpu.memory_space<vmem>>, %arg5: memref<16x16xbf16, #tpu.memory_space<vmem>>, %arg6: memref<128x128xbf16, #tpu.memory_space<vmem>>, %arg7: memref<128x128xbf16, #tpu.memory_space<vmem>>, %arg8: memref<1x128xf32, #tpu.memory_space<vmem>>, %arg9: memref<1x128xf32, #tpu.memory_space<vmem>>, %arg10: memref<128x256xbf16, #tpu.memory_space<vmem>>, %arg11: memref<1x256xf32, #tpu.memory_space<vmem>>, %arg12: memref<256x128xbf16, #tpu.memory_space<vmem>>, %arg13: memref<1x128xf32, #tpu.memory_space<vmem>>, %arg14: memref<2x8x128xf32, #tpu.memory_space<vmem>>, %arg15: memref<2x8x128xf32, #tpu.memory_space<vmem>>) attributes {dimension_semantics = [#tpu.dimension_semantics<parallel>], iteration_bounds = array<i64: 1>, scalar_prefetch = 0 : i64, scratch_operands = 0 : i64, tpu.core_type = #tpu.core_type<tc>, window_params = [{transform_indices = @transform_0, window_bounds = array<i64: 2, 8, 128>}, {pipeline_mode = #tpu.pipeline_mode<synchronous>, transform_indices = @transform_1, window_bounds = array<i64: 1, 128>}, {pipeline_mode = #tpu.pipeline_mode<synchronous>, transform_indices = @transform_2, window_bounds = array<i64: 1, 128>}, {pipeline_mode = #tpu.pipeline_mode<synchronous>, transform_indices = @transform_3, window_bounds = array<i64: 16, 16>}, {pipeline_mode = #tpu.pipeline_mode<synchronous>, transform_indices = @transform_4, window_bounds = array<i64: 16, 16>}, {pipeline_mode = #tpu.pipeline_mode<synchronous>, transform_indices = @transform_5, window_bounds = array<i64: 128, 128>}, {pipeline_mode = #tpu.pipeline_mode<synchronous>, transform_indices = @transform_6, window_bounds = array<i64: 128, 128>}, {pipeline_mode = #tpu.pipeline_mode<synchronous>, transform_indices = @transform_7, window_bounds = array<i64: 1, 128>}, {pipeline_mode = #tpu.pipeline_mode<synchronous>, transform_indices = @transform_8, window_bounds = array<i64: 1, 128>}, {pipeline_mode = #tpu.pipeline_mode<synchronous>, transform_indices = @transform_9, window_bounds = array<i64: 128, 256>}, {pipeline_mode = #tpu.pipeline_mode<synchronous>, transform_indices = @transform_10, window_bounds = array<i64: 1, 256>}, {pipeline_mode = #tpu.pipeline_mode<synchronous>, transform_indices = @transform_11, window_bounds = array<i64: 256, 128>}, {pipeline_mode = #tpu.pipeline_mode<synchronous>, transform_indices = @transform_12, window_bounds = array<i64: 1, 128>}, {transform_indices = @transform_13, window_bounds = array<i64: 2, 8, 128>}, {transform_indices = @transform_14, window_bounds = array<i64: 2, 8, 128>}]} {
    %c0 = arith.constant 0 : index
    %c0_0 = arith.constant 0 : index
    %c0_1 = arith.constant 0 : index
    %0 = vector.load %arg1[%c0, %c0_0, %c0_1] : memref<2x8x128xf32, #tpu.memory_space<vmem>>, vector<2x8x128xf32>
    %c0_2 = arith.constant 0 : index
    %c0_3 = arith.constant 0 : index
    %1 = vector.load %arg2[%c0_2, %c0_3] : memref<1x128xf32, #tpu.memory_space<vmem>>, vector<1x128xf32>
    %c0_4 = arith.constant 0 : index
    %c0_5 = arith.constant 0 : index
    %2 = vector.load %arg3[%c0_4, %c0_5] : memref<1x128xf32, #tpu.memory_space<vmem>>, vector<1x128xf32>
    %cst = arith.constant dense<0.000000e+00> : vector<2x8xf32>
    %3 = vector.multi_reduction <add>, %0, %cst [2] : vector<2x8x128xf32> to vector<2x8xf32>
    %4 = vector.shape_cast %3 : vector<2x8xf32> to vector<2x8x1xf32>
    %cst_6 = arith.constant 1.280000e+02 : f32
    %5 = vector.broadcast %cst_6 : f32 to vector<2x8x1xf32>
    %6 = arith.divf %4, %5 : vector<2x8x1xf32>
    %7 = vector.broadcast %6 : vector<2x8x1xf32> to vector<2x8x128xf32>
    %8 = arith.subf %0, %7 : vector<2x8x128xf32>
    %9 = arith.mulf %8, %8 : vector<2x8x128xf32>
    %cst_7 = arith.constant dense<0.000000e+00> : vector<2x8xf32>
    %10 = vector.multi_reduction <add>, %9, %cst_7 [2] : vector<2x8x128xf32> to vector<2x8xf32>
    %11 = vector.shape_cast %10 : vector<2x8xf32> to vector<2x8x1xf32>
    %cst_8 = arith.constant 1.280000e+02 : f32
    %12 = vector.broadcast %cst_8 : f32 to vector<2x8x1xf32>
    %13 = arith.divf %11, %12 : vector<2x8x1xf32>
    %cst_9 = arith.constant 9.99999974E-6 : f32
    %14 = vector.broadcast %cst_9 : f32 to vector<2x8x1xf32>
    %15 = arith.addf %13, %14 : vector<2x8x1xf32>
    %16 = math.rsqrt %15 : vector<2x8x1xf32>
    %17 = vector.broadcast %16 : vector<2x8x1xf32> to vector<2x8x128xf32>
    %18 = arith.mulf %8, %17 : vector<2x8x128xf32>
    %19 = vector.shape_cast %1 : vector<1x128xf32> to vector<1x1x128xf32>
    %20 = vector.broadcast %19 : vector<1x1x128xf32> to vector<2x8x128xf32>
    %21 = arith.mulf %18, %20 : vector<2x8x128xf32>
    %22 = vector.shape_cast %2 : vector<1x128xf32> to vector<1x1x128xf32>
    %23 = vector.broadcast %22 : vector<1x1x128xf32> to vector<2x8x128xf32>
    %24 = arith.addf %21, %23 : vector<2x8x128xf32>
    %cst_10 = arith.constant dense<0xFF800000> : vector<2x128xf32>
    %25 = vector.multi_reduction <maximumf>, %24, %cst_10 [1] : vector<2x8x128xf32> to vector<2x128xf32>
    %26 = vector.shape_cast %25 : vector<2x128xf32> to vector<2x1x128xf32>
    %27 = vector.broadcast %26 : vector<2x1x128xf32> to vector<2x8x128xf32>
    %28 = arith.subf %24, %27 : vector<2x8x128xf32>
    %29 = math.exp %28 : vector<2x8x128xf32>
    %cst_11 = arith.constant dense<0.000000e+00> : vector<2x128xf32>
    %30 = vector.multi_reduction <add>, %29, %cst_11 [1] : vector<2x8x128xf32> to vector<2x128xf32>
    %31 = vector.shape_cast %30 : vector<2x128xf32> to vector<2x1x128xf32>
    %32 = vector.broadcast %31 : vector<2x1x128xf32> to vector<2x8x128xf32>
    %33 = arith.divf %29, %32 : vector<2x8x128xf32>
    %c0_12 = arith.constant 0 : index
    %c0_13 = arith.constant 0 : index
    %c0_14 = arith.constant 0 : index
    %34 = vector.load %arg15[%c0_12, %c0_13, %c0_14] : memref<2x8x128xf32, #tpu.memory_space<vmem>>, vector<2x8x128xf32>
    tpu.vector_store %arg15[%c0_12, %c0_13, %c0_14], %33 {strides = array<i32>} : memref<2x8x128xf32, #tpu.memory_space<vmem>>, vector<2x8x128xf32>,
    %35 = vector.shape_cast %33 : vector<2x8x128xf32> to vector<16x128xf32>
    %36 = arith.truncf %35 : vector<16x128xf32> to vector<16x128xbf16>
    %c0_15 = arith.constant 0 : index
    %c0_16 = arith.constant 0 : index
    %37 = vector.load %arg4[%c0_15, %c0_16] : memref<16x16xbf16, #tpu.memory_space<vmem>>, vector<16x16xbf16>
    %cst_17 = arith.constant dense<0.000000e+00> : vector<16x128xf32>
    %38 = tpu.matmul %37, %36, %cst_17 {dimension_numbers = #tpu.dot_dimension_numbers<[1], [0], [0], [1], [0, 0, 1, 1], [], []>} : vector<16x16xbf16>, vector<16x128xbf16>, vector<16x128xf32> -> vector<16x128xf32>
    %c0_18 = arith.constant 0 : index
    %c0_19 = arith.constant 0 : index
    %39 = vector.load %arg5[%c0_18, %c0_19] : memref<16x16xbf16, #tpu.memory_space<vmem>>, vector<16x16xbf16>
    %cst_20 = arith.constant dense<0.000000e+00> : vector<16x128xf32>
    %40 = tpu.matmul %39, %36, %cst_20 {dimension_numbers = #tpu.dot_dimension_numbers<[1], [0], [0], [1], [0, 0, 1, 1], [], []>} : vector<16x16xbf16>, vector<16x128xbf16>, vector<16x128xf32> -> vector<16x128xf32>
    %41 = arith.truncf %38 : vector<16x128xf32> to vector<16x128xbf16>
    %c0_21 = arith.constant 0 : index
    %c0_22 = arith.constant 0 : index
    %42 = vector.load %arg6[%c0_21, %c0_22] : memref<128x128xbf16, #tpu.memory_space<vmem>>, vector<128x128xbf16>
    %cst_23 = arith.constant dense<0.000000e+00> : vector<16x128xf32>
    %43 = tpu.matmul %41, %42, %cst_23 {dimension_numbers = #tpu.dot_dimension_numbers<[1], [0], [0], [1], [0, 0, 1, 1], [], []>} : vector<16x128xbf16>, vector<128x128xbf16>, vector<16x128xf32> -> vector<16x128xf32>
    %44 = arith.truncf %40 : vector<16x128xf32> to vector<16x128xbf16>
    %c0_24 = arith.constant 0 : index
    %c0_25 = arith.constant 0 : index
    %45 = vector.load %arg7[%c0_24, %c0_25] : memref<128x128xbf16, #tpu.memory_space<vmem>>, vector<128x128xbf16>
    %cst_26 = arith.constant dense<0.000000e+00> : vector<16x128xf32>
    %46 = tpu.matmul %44, %45, %cst_26 {dimension_numbers = #tpu.dot_dimension_numbers<[1], [0], [0], [1], [0, 0, 1, 1], [], []>} : vector<16x128xbf16>, vector<128x128xbf16>, vector<16x128xf32> -> vector<16x128xf32>
    %47 = arith.subf %43, %46 : vector<16x128xf32>
    %48 = vector.shape_cast %0 : vector<2x8x128xf32> to vector<16x128xf32>
    %49 = arith.addf %47, %48 : vector<16x128xf32>
    %c0_27 = arith.constant 0 : index
    %c0_28 = arith.constant 0 : index
    %50 = vector.load %arg8[%c0_27, %c0_28] : memref<1x128xf32, #tpu.memory_space<vmem>>, vector<1x128xf32>
    %c0_29 = arith.constant 0 : index
    %c0_30 = arith.constant 0 : index
    %51 = vector.load %arg9[%c0_29, %c0_30] : memref<1x128xf32, #tpu.memory_space<vmem>>, vector<1x128xf32>
    %cst_31 = arith.constant dense<0.000000e+00> : vector<16xf32>
    %52 = vector.multi_reduction <add>, %49, %cst_31 [1] : vector<16x128xf32> to vector<16xf32>
    %53 = vector.shape_cast %52 : vector<16xf32> to vector<16x1xf32>
    %cst_32 = arith.constant 1.280000e+02 : f32
    %54 = vector.broadcast %cst_32 : f32 to vector<16x1xf32>
    %55 = arith.divf %53, %54 : vector<16x1xf32>
    %56 = vector.broadcast %55 : vector<16x1xf32> to vector<16x128xf32>
    %57 = arith.subf %49, %56 : vector<16x128xf32>
    %58 = arith.mulf %57, %57 : vector<16x128xf32>
    %cst_33 = arith.constant dense<0.000000e+00> : vector<16xf32>
    %59 = vector.multi_reduction <add>, %58, %cst_33 [1] : vector<16x128xf32> to vector<16xf32>
    %60 = vector.shape_cast %59 : vector<16xf32> to vector<16x1xf32>
    %cst_34 = arith.constant 1.280000e+02 : f32
    %61 = vector.broadcast %cst_34 : f32 to vector<16x1xf32>
    %62 = arith.divf %60, %61 : vector<16x1xf32>
    %cst_35 = arith.constant 9.99999974E-6 : f32
    %63 = vector.broadcast %cst_35 : f32 to vector<16x1xf32>
    %64 = arith.addf %62, %63 : vector<16x1xf32>
    %65 = math.rsqrt %64 : vector<16x1xf32>
    %66 = vector.broadcast %65 : vector<16x1xf32> to vector<16x128xf32>
    %67 = arith.mulf %57, %66 : vector<16x128xf32>
    %68 = vector.broadcast %50 : vector<1x128xf32> to vector<16x128xf32>
    %69 = arith.mulf %67, %68 : vector<16x128xf32>
    %70 = vector.broadcast %51 : vector<1x128xf32> to vector<16x128xf32>
    %71 = arith.addf %69, %70 : vector<16x128xf32>
    %72 = arith.truncf %71 : vector<16x128xf32> to vector<16x128xbf16>
    %c0_36 = arith.constant 0 : index
    %c0_37 = arith.constant 0 : index
    %73 = vector.load %arg10[%c0_36, %c0_37] : memref<128x256xbf16, #tpu.memory_space<vmem>>, vector<128x256xbf16>
    %cst_38 = arith.constant dense<0.000000e+00> : vector<16x256xf32>
    %74 = tpu.matmul %72, %73, %cst_38 {dimension_numbers = #tpu.dot_dimension_numbers<[1], [0], [0], [1], [0, 0, 1, 1], [], []>} : vector<16x128xbf16>, vector<128x256xbf16>, vector<16x256xf32> -> vector<16x256xf32>
    %c0_39 = arith.constant 0 : index
    %c0_40 = arith.constant 0 : index
    %75 = vector.load %arg11[%c0_39, %c0_40] : memref<1x256xf32, #tpu.memory_space<vmem>>, vector<1x256xf32>
    %76 = vector.broadcast %75 : vector<1x256xf32> to vector<16x256xf32>
    %77 = arith.addf %74, %76 : vector<16x256xf32>
    %cst_41 = arith.constant 5.000000e-01 : f32
    %78 = vector.broadcast %cst_41 : f32 to vector<16x256xf32>
    %79 = arith.mulf %78, %77 : vector<16x256xf32>
    %cst_42 = arith.constant 4.471500e-02 : f32
    %80 = vector.broadcast %cst_42 : f32 to vector<16x256xf32>
    %81 = arith.mulf %80, %77 : vector<16x256xf32>
    %82 = arith.mulf %81, %77 : vector<16x256xf32>
    %83 = arith.mulf %82, %77 : vector<16x256xf32>
    %84 = arith.addf %77, %83 : vector<16x256xf32>
    %cst_43 = arith.constant 0.797884583 : f32
    %85 = vector.broadcast %cst_43 : f32 to vector<16x256xf32>
    %86 = arith.mulf %85, %84 : vector<16x256xf32>
    %87 = math.tanh %86 : vector<16x256xf32>
    %cst_44 = arith.constant 1.000000e+00 : f32
    %88 = vector.broadcast %cst_44 : f32 to vector<16x256xf32>
    %89 = arith.addf %88, %87 : vector<16x256xf32>
    %90 = arith.mulf %79, %89 : vector<16x256xf32>
    %91 = arith.truncf %90 : vector<16x256xf32> to vector<16x256xbf16>
    %c0_45 = arith.constant 0 : index
    %c0_46 = arith.constant 0 : index
    %92 = vector.load %arg12[%c0_45, %c0_46] : memref<256x128xbf16, #tpu.memory_space<vmem>>, vector<256x128xbf16>
    %cst_47 = arith.constant dense<0.000000e+00> : vector<16x128xf32>
    %93 = tpu.matmul %91, %92, %cst_47 {dimension_numbers = #tpu.dot_dimension_numbers<[1], [0], [0], [1], [0, 0, 1, 1], [], []>} : vector<16x256xbf16>, vector<256x128xbf16>, vector<16x128xf32> -> vector<16x128xf32>
    %c0_48 = arith.constant 0 : index
    %c0_49 = arith.constant 0 : index
    %94 = vector.load %arg13[%c0_48, %c0_49] : memref<1x128xf32, #tpu.memory_space<vmem>>, vector<1x128xf32>
    %95 = vector.broadcast %94 : vector<1x128xf32> to vector<16x128xf32>
    %96 = arith.addf %93, %95 : vector<16x128xf32>
    %97 = arith.addf %96, %49 : vector<16x128xf32>
    %98 = vector.shape_cast %97 : vector<16x128xf32> to vector<2x8x128xf32>
    %c0_50 = arith.constant 0 : index
    %c0_51 = arith.constant 0 : index
    %c0_52 = arith.constant 0 : index
    %99 = vector.load %arg14[%c0_50, %c0_51, %c0_52] : memref<2x8x128xf32, #tpu.memory_space<vmem>>, vector<2x8x128xf32>
    tpu.vector_store %arg14[%c0_50, %c0_51, %c0_52], %98 {strides = array<i32>} : memref<2x8x128xf32, #tpu.memory_space<vmem>>, vector<2x8x128xf32>,
    return
  }
  func.func @transform_0(%arg0: i32) -> (i32, i32, i32) {
    %c0_i32 = arith.constant 0 : i32
    %c0_i32_0 = arith.constant 0 : i32
    %c0_i32_1 = arith.constant 0 : i32
    return %arg0, %c0_i32, %c0_i32_0 : i32, i32, i32
  }
  func.func @transform_1(%arg0: i32) -> (i32, i32) {
    %c0_i32 = arith.constant 0 : i32
    %c0_i32_0 = arith.constant 0 : i32
    %c0_i32_1 = arith.constant 0 : i32
    return %c0_i32, %c0_i32_0 : i32, i32
  }
  func.func @transform_2(%arg0: i32) -> (i32, i32) {
    %c0_i32 = arith.constant 0 : i32
    %c0_i32_0 = arith.constant 0 : i32
    %c0_i32_1 = arith.constant 0 : i32
    return %c0_i32, %c0_i32_0 : i32, i32
  }
  func.func @transform_3(%arg0: i32) -> (i32, i32) {
    %c0_i32 = arith.constant 0 : i32
    %c0_i32_0 = arith.constant 0 : i32
    %c0_i32_1 = arith.constant 0 : i32
    return %c0_i32, %c0_i32_0 : i32, i32
  }
  func.func @transform_4(%arg0: i32) -> (i32, i32) {
    %c0_i32 = arith.constant 0 : i32
    %c0_i32_0 = arith.constant 0 : i32
    %c0_i32_1 = arith.constant 0 : i32
    return %c0_i32, %c0_i32_0 : i32, i32
  }
  func.func @transform_5(%arg0: i32) -> (i32, i32) {
    %c0_i32 = arith.constant 0 : i32
    %c0_i32_0 = arith.constant 0 : i32
    %c0_i32_1 = arith.constant 0 : i32
    return %c0_i32, %c0_i32_0 : i32, i32
  }
  func.func @transform_6(%arg0: i32) -> (i32, i32) {
    %c0_i32 = arith.constant 0 : i32
    %c0_i32_0 = arith.constant 0 : i32
    %c0_i32_1 = arith.constant 0 : i32
    return %c0_i32, %c0_i32_0 : i32, i32
  }
  func.func @transform_7(%arg0: i32) -> (i32, i32) {
    %c0_i32 = arith.constant 0 : i32
    %c0_i32_0 = arith.constant 0 : i32
    %c0_i32_1 = arith.constant 0 : i32
    return %c0_i32, %c0_i32_0 : i32, i32
  }
  func.func @transform_8(%arg0: i32) -> (i32, i32) {
    %c0_i32 = arith.constant 0 : i32
    %c0_i32_0 = arith.constant 0 : i32
    %c0_i32_1 = arith.constant 0 : i32
    return %c0_i32, %c0_i32_0 : i32, i32
  }
  func.func @transform_9(%arg0: i32) -> (i32, i32) {
    %c0_i32 = arith.constant 0 : i32
    %c0_i32_0 = arith.constant 0 : i32
    %c0_i32_1 = arith.constant 0 : i32
    return %c0_i32, %c0_i32_0 : i32, i32
  }
  func.func @transform_10(%arg0: i32) -> (i32, i32) {
    %c0_i32 = arith.constant 0 : i32
    %c0_i32_0 = arith.constant 0 : i32
    %c0_i32_1 = arith.constant 0 : i32
    return %c0_i32, %c0_i32_0 : i32, i32
  }
  func.func @transform_11(%arg0: i32) -> (i32, i32) {
    %c0_i32 = arith.constant 0 : i32
    %c0_i32_0 = arith.constant 0 : i32
    %c0_i32_1 = arith.constant 0 : i32
    return %c0_i32, %c0_i32_0 : i32, i32
  }
  func.func @transform_12(%arg0: i32) -> (i32, i32) {
    %c0_i32 = arith.constant 0 : i32
    %c0_i32_0 = arith.constant 0 : i32
    %c0_i32_1 = arith.constant 0 : i32
    return %c0_i32, %c0_i32_0 : i32, i32
  }
  func.func @transform_13(%arg0: i32) -> (i32, i32, i32) {
    %c0_i32 = arith.constant 0 : i32
    %c0_i32_0 = arith.constant 0 : i32
    %c0_i32_1 = arith.constant 0 : i32
    return %arg0, %c0_i32, %c0_i32_0 : i32, i32, i32
  }
  func.func @transform_14(%arg0: i32) -> (i32, i32, i32) {
    %c0_i32 = arith.constant 0 : i32
    %c0_i32_0 = arith.constant 0 : i32
    %c0_i32_1 = arith.constant 0 : i32
    return %arg0, %c0_i32, %c0_i32_0 : i32, i32, i32
  }
}

</mosaic_0001>

<llo_original>
// kernel: tpu_custom_call.1
$region0: #{tpu_custom_call.1}
  #allocation0 [shape = 'u32[]', space=smem, size = 0x4, offset = 0x4, fixed_abs, tag = 'smem constant byte address 0x4 - core index']
  #allocation1 [shape = 'u32[144,128]{1,0:T(1,128)}', space=vmem, size = 0x12000, scoped, tag = 'internal scratch']
  %s0 = inlined_call_operand.hbm [shape: f32[2,8,128], index: 0, kind: input, shape index: {}]
  %s1 = inlined_call_operand.vmem [shape: f32[1,128], index: 1, kind: input, shape index: {}]
  %s2 = inlined_call_operand.hbm [shape: f32[1,128], index: 2, kind: input, shape index: {}]
  %s3 = inlined_call_operand.vmem [shape: bf16[16,16], index: 3, kind: input, shape index: {}]
  %s4 = inlined_call_operand.hbm [shape: bf16[16,16], index: 4, kind: input, shape index: {}]
  %s5 = inlined_call_operand.hbm [shape: bf16[128,128], index: 5, kind: input, shape index: {}]
  %s6 = inlined_call_operand.hbm [shape: bf16[128,128], index: 6, kind: input, shape index: {}]
  %s7 = inlined_call_operand.vmem [shape: f32[1,128], index: 7, kind: input, shape index: {}]
  %s8 = inlined_call_operand.vmem [shape: f32[1,128], index: 8, kind: input, shape index: {}]
  %s9 = inlined_call_operand.hbm [shape: bf16[128,256], index: 9, kind: input, shape index: {}]
  %s10 = inlined_call_operand.vmem [shape: f32[1,256], index: 10, kind: input, shape index: {}]
  %s11 = inlined_call_operand.hbm [shape: bf16[256,128], index: 11, kind: input, shape index: {}]
  %s12 = inlined_call_operand.vmem [shape: f32[1,128], index: 12, kind: input, shape index: {}]
  %s13 = inlined_call_operand.hbm [shape: f32[2,8,128], index: 13, kind: output, shape index: {0}]
  %s14 = inlined_call_operand.hbm [shape: f32[2,8,128], index: 14, kind: output, shape index: {1}]
  %15 = xla_tuple %s13, %s14
  %s16 = sld [smem:[#allocation0]]
  $region98: #{tpu_custom_call.1} parent=0
    _
  %s18 = ssub.s32 1, %s16
  %s19 = scalar_select 0, %s18, %s16
  $region1: #{tpu_custom_call.1} parent=0
    #allocation2 [shape = 'u8[8192]{0}', space=vmem, size = 0x2000, scoped, tag = 'input window, operand 0, single buffered']
    #allocation3 [shape = 's32[1]{0}', space=sflag, size = 0x4, scoped, tag = 'scoped memory for tpu_custom_call.1']
    #allocation4 [shape = 's32[1]{0}', space=sflag, size = 0x4, scoped, tag = 'scoped memory for tpu_custom_call.1']
    #allocation5 [shape = 'u8[512]{0}', space=vmem, size = 0x400, scoped, tag = 'input window, operand 2, single buffered']
    #allocation6 [shape = 's32[1]{0}', space=sflag, size = 0x4, scoped, tag = 'scoped memory for tpu_custom_call.1']
    #allocation7 [shape = 'u8[4096]{0}', space=vmem, size = 0x1000, scoped, tag = 'input window, operand 4, single buffered']
    #allocation8 [shape = 'u8[32768]{0}', space=vmem, size = 0x8000, scoped, tag = 'input window, operand 5, single buffered']
    #allocation9 [shape = 's32[1]{0}', space=sflag, size = 0x4, scoped, tag = 'scoped memory for tpu_custom_call.1']
    #allocation10 [shape = 'u8[32768]{0}', space=vmem, size = 0x8000, scoped, tag = 'input window, operand 6, single buffered']
    #allocation11 [shape = 'u8[65536]{0}', space=vmem, size = 0x10000, scoped, tag = 'input window, operand 9, single buffered']
    #allocation12 [shape = 's32[1]{0}', space=sflag, size = 0x4, scoped, tag = 'scoped memory for tpu_custom_call.1']
    #allocation13 [shape = 'u8[65536]{0}', space=vmem, size = 0x10000, scoped, tag = 'input window, operand 11, single buffered']
    #allocation14 [shape = 'u8[8192]{0}', space=vmem, size = 0x2000, scoped, tag = 'output window, operand 0, single buffered']
    #allocation15 [shape = 'u8[8192]{0}', space=vmem, size = 0x2000, scoped, tag = 'output window, operand 1, single buffered']
    #allocation16 [shape = 's32[1]{0}', space=sflag, size = 0x4, scoped, tag = 'scoped memory for tpu_custom_call.1']
    %20 = vsyncpa [#allocation3], 0
    %21 = vsyncpa [#allocation6], 0
    %22 = vsyncpa [#allocation9], 0
    %23 = vsyncpa [#allocation12], 0
    %24 = vsyncpa [#allocation4], 0
    %25 = vsyncpa [#allocation16], 0
    // Predicated region
    $region2: #{tpu_custom_call.1} parent=1 // pred_check
      _
    $region3: #{tpu_custom_call.1} parent=1 // pred_check_branch
      %27 = sbr.rel (0) target = $region5
    $region4: #{tpu_custom_call.1} parent=1 // pred_region
      %s29 = ssub.s32 256, 256
      %30 = vsyncadd [#allocation3], %s29
      %s31 = sshll.u32 [#allocation2], 4
      %s32 = int_to_ptr.vmem [resolvable:$true] %s31
      %37 = dma.hbm_to_vmem [thread:$0]  %s0, 256, %s32, [#allocation3], 128, 128, 8
    $region5: #{tpu_custom_call.1} parent=1 // pred_fallthru
      _
    // Predicated region
    $region6: #{tpu_custom_call.1} parent=1 // pred_check
      _
    $region7: #{tpu_custom_call.1} parent=1 // pred_check_branch
      %39 = sbr.rel (0) target = $region9
    $region8: #{tpu_custom_call.1} parent=1 // pred_region
      _
    $region9: #{tpu_custom_call.1} parent=1 // pred_fallthru
      _
    // Predicated region
    $region10: #{tpu_custom_call.1} parent=1 // pred_check
      _
    $region11: #{tpu_custom_call.1} parent=1 // pred_check_branch
      %41 = sbr.rel (0) target = $region13
    $region12: #{tpu_custom_call.1} parent=1 // pred_region
      %s43 = ssub.s32 16, 16
      %44 = vsyncadd [#allocation6], %s43
      %s46 = sshll.u32 [#allocation5], 4
      %s47 = int_to_ptr.vmem [resolvable:$true] %s46
      %49 = dma.hbm_to_vmem [thread:$0]  %s2, 16, %s47, [#allocation6]
    $region13: #{tpu_custom_call.1} parent=1 // pred_fallthru
      _
    // Predicated region
    $region14: #{tpu_custom_call.1} parent=1 // pred_check
      _
    $region15: #{tpu_custom_call.1} parent=1 // pred_check_branch
      %51 = sbr.rel (0) target = $region17
    $region16: #{tpu_custom_call.1} parent=1 // pred_region
      _
    $region17: #{tpu_custom_call.1} parent=1 // pred_fallthru
      _
    // Predicated region
    $region18: #{tpu_custom_call.1} parent=1 // pred_check
      _
    $region19: #{tpu_custom_call.1} parent=1 // pred_check_branch
      %53 = sbr.rel (0) target = $region21
    $region20: #{tpu_custom_call.1} parent=1 // pred_region
      %s55 = ssub.s32 128, 128
      %56 = vsyncadd [#allocation6], %s55
      %s57 = sshll.u32 [#allocation7], 4
      %s58 = int_to_ptr.vmem [resolvable:$true] %s57
      %63 = dma.hbm_to_vmem [thread:$0]  %s4, 128, %s58, [#allocation6], 64, 64, 4
    $region21: #{tpu_custom_call.1} parent=1 // pred_fallthru
      _
    // Predicated region
    $region22: #{tpu_custom_call.1} parent=1 // pred_check
      _
    $region23: #{tpu_custom_call.1} parent=1 // pred_check_branch
      %65 = sbr.rel (0) target = $region25
    $region24: #{tpu_custom_call.1} parent=1 // pred_region
      %s67 = ssub.s32 1024, 1024
      %68 = vsyncadd [#allocation9], %s67
      %s69 = sshll.u32 [#allocation8], 4
      %s70 = int_to_ptr.vmem [resolvable:$true] %s69
      %75 = dma.hbm_to_vmem [thread:$0]  %s5, 1024, %s70, [#allocation9], 64, 64, 4
    $region25: #{tpu_custom_call.1} parent=1 // pred_fallthru
      _
    // Predicated region
    $region26: #{tpu_custom_call.1} parent=1 // pred_check
      _
    $region27: #{tpu_custom_call.1} parent=1 // pred_check_branch
      %77 = sbr.rel (0) target = $region29
    $region28: #{tpu_custom_call.1} parent=1 // pred_region
      %s79 = ssub.s32 1024, 1024
      %80 = vsyncadd [#allocation9], %s79
      %s81 = sshll.u32 [#allocation10], 4
      %s82 = int_to_ptr.vmem [resolvable:$true] %s81
      %87 = dma.hbm_to_vmem [thread:$0]  %s6, 1024, %s82, [#allocation9], 64, 64, 4
    $region29: #{tpu_custom_call.1} parent=1 // pred_fallthru
      _
    // Predicated region
    $region30: #{tpu_custom_call.1} parent=1 // pred_check
      _
    $region31: #{tpu_custom_call.1} parent=1 // pred_check_branch
      %89 = sbr.rel (0) target = $region33
    $region32: #{tpu_custom_call.1} parent=1 // pred_region
      _
    $region33: #{tpu_custom_call.1} parent=1 // pred_fallthru
      _
    // Predicated region
    $region34: #{tpu_custom_call.1} parent=1 // pred_check
      _
    $region35: #{tpu_custom_call.1} parent=1 // pred_check_branch
      %91 = sbr.rel (0) target = $region37
    $region36: #{tpu_custom_call.1} parent=1 // pred_region
      _
    $region37: #{tpu_custom_call.1} parent=1 // pred_fallthru
      _
    // Predicated region
    $region38: #{tpu_custom_call.1} parent=1 // pred_check
      _
    $region39: #{tpu_custom_call.1} parent=1 // pred_check_branch
      %93 = sbr.rel (0) target = $region41
    $region40: #{tpu_custom_call.1} parent=1 // pred_region
      %s95 = ssub.s32 2048, 2048
      %96 = vsyncadd [#allocation12], %s95
      %s97 = sshll.u32 [#allocation11], 4
      %s98 = int_to_ptr.vmem [resolvable:$true] %s97
      %103 = dma.hbm_to_vmem [thread:$0]  %s9, 2048, %s98, [#allocation12], 128, 128, 8
    $region41: #{tpu_custom_call.1} parent=1 // pred_fallthru
      _
    // Predicated region
    $region42: #{tpu_custom_call.1} parent=1 // pred_check
      _
    $region43: #{tpu_custom_call.1} parent=1 // pred_check_branch
      %105 = sbr.rel (0) target = $region45
    $region44: #{tpu_custom_call.1} parent=1 // pred_region
      _
    $region45: #{tpu_custom_call.1} parent=1 // pred_fallthru
      _
    // Predicated region
    $region46: #{tpu_custom_call.1} parent=1 // pred_check
      _
    $region47: #{tpu_custom_call.1} parent=1 // pred_check_branch
      %107 = sbr.rel (0) target = $region49
    $region48: #{tpu_custom_call.1} parent=1 // pred_region
      %s109 = ssub.s32 2048, 2048
      %110 = vsyncadd [#allocation12], %s109
      %s111 = sshll.u32 [#allocation13], 4
      %s112 = int_to_ptr.vmem [resolvable:$true] %s111
      %117 = dma.hbm_to_vmem [thread:$0]  %s11, 2048, %s112, [#allocation12], 64, 64, 4
    $region49: #{tpu_custom_call.1} parent=1 // pred_fallthru
      _
    // Predicated region
    $region50: #{tpu_custom_call.1} parent=1 // pred_check
      _
    $region51: #{tpu_custom_call.1} parent=1 // pred_check_branch
      %119 = sbr.rel (0) target = $region53
    $region52: #{tpu_custom_call.1} parent=1 // pred_region
      _
    $region53: #{tpu_custom_call.1} parent=1 // pred_fallthru
      _
    // Predicated region
    $region54: #{tpu_custom_call.1} parent=1 // pred_check
      _
    $region55: #{tpu_custom_call.1} parent=1 // pred_check_branch
      %121 = sbr.rel (0) target = $region57
    $region56: #{tpu_custom_call.1} parent=1 // pred_region
      %122 = dma.done [#allocation3], 256
    $region57: #{tpu_custom_call.1} parent=1 // pred_fallthru
      _
    // Predicated region
    $region58: #{tpu_custom_call.1} parent=1 // pred_check
      _
    $region59: #{tpu_custom_call.1} parent=1 // pred_check_branch
      %124 = sbr.rel (0) target = $region61
    $region60: #{tpu_custom_call.1} parent=1 // pred_region
      %125 = dma.done [#allocation6], 16
    $region61: #{tpu_custom_call.1} parent=1 // pred_fallthru
      _
    // Predicated region
    $region62: #{tpu_custom_call.1} parent=1 // pred_check
      _
    $region63: #{tpu_custom_call.1} parent=1 // pred_check_branch
      %127 = sbr.rel (0) target = $region65
    $region64: #{tpu_custom_call.1} parent=1 // pred_region
      %128 = dma.done [#allocation6], 128
    $region65: #{tpu_custom_call.1} parent=1 // pred_fallthru
      _
    // Predicated region
    $region66: #{tpu_custom_call.1} parent=1 // pred_check
      _
    $region67: #{tpu_custom_call.1} parent=1 // pred_check_branch
      %130 = sbr.rel (0) target = $region69
    $region68: #{tpu_custom_call.1} parent=1 // pred_region
      %131 = dma.done [#allocation9], 1024
    $region69: #{tpu_custom_call.1} parent=1 // pred_fallthru
      _
    // Predicated region
    $region70: #{tpu_custom_call.1} parent=1 // pred_check
      _
    $region71: #{tpu_custom_call.1} parent=1 // pred_check_branch
      %133 = sbr.rel (0) target = $region73
    $region72: #{tpu_custom_call.1} parent=1 // pred_region
      %134 = dma.done [#allocation9], 1024
    $region73: #{tpu_custom_call.1} parent=1 // pred_fallthru
      _
    // Predicated region
    $region74: #{tpu_custom_call.1} parent=1 // pred_check
      _
    $region75: #{tpu_custom_call.1} parent=1 // pred_check_branch
      %136 = sbr.rel (0) target = $region77
    $region76: #{tpu_custom_call.1} parent=1 // pred_region
      %137 = dma.done [#allocation12], 2048
    $region77: #{tpu_custom_call.1} parent=1 // pred_fallthru
      _
    // Predicated region
    $region78: #{tpu_custom_call.1} parent=1 // pred_check
      _
    $region79: #{tpu_custom_call.1} parent=1 // pred_check_branch
      %139 = sbr.rel (0) target = $region81
    $region80: #{tpu_custom_call.1} parent=1 // pred_region
      %140 = dma.done [#allocation12], 2048
    $region81: #{tpu_custom_call.1} parent=1 // pred_fallthru
      _
    %v142 = vld [vmem:[#allocation2] sm:$0xff]
    %v143 = vld [vmem:[#allocation2 + $0x8] sm:$0xff]
    %v144 = vld [vmem:[%s1] sm:$0x1]
    %v145 = vld [vmem:[#allocation5] sm:$0x1]
    %146 = vadd.xlane.f32.xlu0 %v142
    %v147 = vpop.xlane.xlu0 %146
    %148 = vadd.xlane.f32.xlu0 %v143
    %v149 = vpop.xlane.xlu0 %148
    %v150 = vrcp.pop 128.0
    %v151 = vmul.f32 %v147, %v150
    %v152 = vmul.f32 %v149, %v150
    %v153 = vsub.f32 %v142, %v151
    %v154 = vsub.f32 %v143, %v152
    %v155 = vmul.f32 %v153, %v153
    %v156 = vmul.f32 %v154, %v154
    %157 = vadd.xlane.f32.xlu0 %v155
    %v158 = vpop.xlane.xlu0 %157
    %159 = vadd.xlane.f32.xlu0 %v156
    %v160 = vpop.xlane.xlu0 %159
    %v161 = vmul.f32 %v158, %v150
    %v162 = vmul.f32 %v160, %v150
    %v163 = vadd.f32 %v161, 1e-05
    %v164 = vadd.f32 %v162, 1e-05
    %v165 = vrsqrt.pop %v163
    %v166 = vrsqrt.pop %v164
    %v167 = vmul.f32 %v153, %v165
    %v168 = vmul.f32 %v154, %v166
    %v170 = vlaneseq
    %v171 = vshrl.u32 %v170, 7
    %v172 = vsub.s32 0, %v171
    %v173 = vrot.slane %v144, %v172
    %v175 = vmul.f32 %v167, %v173
    %v176 = vmul.f32 %v168, %v173
    %v178 = vlaneseq
    %v179 = vshrl.u32 %v178, 7
    %v180 = vsub.s32 0, %v179
    %v181 = vrot.slane %v145, %v180
    %v183 = vadd.f32 %v175, %v181
    %v184 = vadd.f32 %v176, %v181
    %v185 = vrot.slane %v183, 4
    %v186 = vmax.f32 %v183, %v185
    %v187 = vrot.slane %v186, 2
    %v188 = vmax.f32 %v186, %v187
    %v189 = vrot.slane %v188, 1
    %v190 = vmax.f32 %v188, %v189
    %v191 = vrot.slane %v184, 4
    %v192 = vmax.f32 %v184, %v191
    %v193 = vrot.slane %v192, 2
    %v194 = vmax.f32 %v192, %v193
    %v195 = vrot.slane %v194, 1
    %v196 = vmax.f32 %v194, %v195
    %v197 = vsub.f32 %v183, %v190
    %v198 = vsub.f32 %v184, %v196
    %v199 = vmul.f32 %v197, 1.442695
    %v200 = vpow.pop %v199
    %v201 = vmul.f32 %v198, 1.442695
    %v202 = vpow.pop %v201
    %v203 = vrot.slane %v200, 4
    %v204 = vadd.f32 %v200, %v203
    %v205 = vrot.slane %v204, 2
    %v206 = vadd.f32 %v204, %v205
    %v207 = vrot.slane %v206, 1
    %v208 = vadd.f32 %v206, %v207
    %v209 = vrot.slane %v202, 4
    %v210 = vadd.f32 %v202, %v209
    %v211 = vrot.slane %v210, 2
    %v212 = vadd.f32 %v210, %v211
    %v213 = vrot.slane %v212, 1
    %v214 = vadd.f32 %v212, %v213
    %v215 = vrcp.pop %v208
    %v216 = vmul.f32 %v200, %v215
    %v217 = vrcp.pop %v214
    %v218 = vmul.f32 %v202, %v217
    %219 = vst [vmem:[#allocation15] sm:$0xff] %v216
    %220 = vst [vmem:[#allocation15 + $0x8] sm:$0xff] %v218
    %v221 = vpack.c.bf16 %v218, %v216
    %v222 = vld [vmem:[%s3] sm:$0xf]
    %v223 = vld [vmem:[%s3 + $0x4] sm:$0xf]
    %v226 = vunpack.c.l.b16 %v222
    %v227 = vunpack.c.l.b16 %v223
    %v228 = vpack.c.b16 %v227, %v226
    %vm229 = vcmask 130048
    %v231 = vsel %vm229, %v228, 0
    %233 = vmatprep.subr.bf16.mxu0 0
    %234 = vmatpush1.bf16.msra.mxu0 %v221
    %235 = vmatprep.subr.bf16.mxu0 0
    %236 = vmatpush1.bf16.msra.mxu0 0
    %237 = vmatprep.subr.bf16.mxu0 0
    %238 = vmatpush1.bf16.msra.mxu0 0
    %239 = vmatprep.subr.bf16.mxu0 0
    %240 = vmatpush1.bf16.msra.mxu0 0
    %241 = vmatprep.subr.bf16.mxu0 0
    %242 = vmatpush1.bf16.msra.mxu0 0
    %243 = vmatprep.subr.bf16.mxu0 0
    %244 = vmatpush1.bf16.msra.mxu0 0
    %245 = vmatprep.subr.bf16.mxu0 0
    %246 = vmatpush1.bf16.msra.mxu0 0
    %247 = vmatprep.subr.bf16.mxu0 0
    %248 = vmatpush1.bf16.msra.mxu0 0
    %249 = vmatprep.subr.bf16.mxu0 0
    %250 = vmatpush1.bf16.msra.mxu0 0
    %251 = vmatprep.subr.bf16.mxu0 0
    %252 = vmatpush1.bf16.msra.mxu0 0
    %253 = vmatprep.subr.bf16.mxu0 0
    %254 = vmatpush1.bf16.msra.mxu0 0
    %255 = vmatprep.subr.bf16.mxu0 0
    %256 = vmatpush1.bf16.msra.mxu0 0
    %257 = vmatprep.subr.bf16.mxu0 0
    %258 = vmatpush1.bf16.msra.mxu0 0
    %259 = vmatprep.subr.bf16.mxu0 0
    %260 = vmatpush1.bf16.msra.mxu0 0
    %261 = vmatprep.subr.bf16.mxu0 0
    %262 = vmatpush1.bf16.msra.mxu0 0
    %263 = vmatprep.subr.bf16.mxu0 0
    %264 = vmatpush1.bf16.msra.mxu0 0
    %265 = vmatprep.mubr.bf16.mxu0 0
    %266 = vmatmul.mubr.bf16.gmra.mrb[0].mxu0 %v231
    %v267 = vpop.f32.mrb[0].mxu0
    %v268 = vadd.f32 0.0, %v267
    %v269 = vpop.f32.mrb[0].mxu0
    %v270 = vpop.f32.mrb[0].mxu0
    %v271 = vadd.f32 0.0, %v270
    %v272 = vpop.f32.mrb[0].mxu0
    %273 = vdwg.mxu0
    %v274 = vld [vmem:[#allocation7] sm:$0xf]
    %v275 = vld [vmem:[#allocation7 + $0x4] sm:$0xf]
    %v278 = vunpack.c.l.b16 %v274
    %v279 = vunpack.c.l.b16 %v275
    %v280 = vpack.c.b16 %v279, %v278
    %v282 = vsel %vm229, %v280, 0
    %284 = vmatprep.subr.bf16.mxu0 0
    %285 = vmatpush1.bf16.msra.mxu0 %v221
    %286 = vmatprep.subr.bf16.mxu0 0
    %287 = vmatpush1.bf16.msra.mxu0 0
    %288 = vmatprep.subr.bf16.mxu0 0
    %289 = vmatpush1.bf16.msra.mxu0 0
    %290 = vmatprep.subr.bf16.mxu0 0
    %291 = vmatpush1.bf16.msra.mxu0 0
    %292 = vmatprep.subr.bf16.mxu0 0
    %293 = vmatpush1.bf16.msra.mxu0 0
    %294 = vmatprep.subr.bf16.mxu0 0
    %295 = vmatpush1.bf16.msra.mxu0 0
    %296 = vmatprep.subr.bf16.mxu0 0
    %297 = vmatpush1.bf16.msra.mxu0 0
    %298 = vmatprep.subr.bf16.mxu0 0
    %299 = vmatpush1.bf16.msra.mxu0 0
    %300 = vmatprep.subr.bf16.mxu0 0
    %301 = vmatpush1.bf16.msra.mxu0 0
    %302 = vmatprep.subr.bf16.mxu0 0
    %303 = vmatpush1.bf16.msra.mxu0 0
    %304 = vmatprep.subr.bf16.mxu0 0
    %305 = vmatpush1.bf16.msra.mxu0 0
    %306 = vmatprep.subr.bf16.mxu0 0
    %307 = vmatpush1.bf16.msra.mxu0 0
    %308 = vmatprep.subr.bf16.mxu0 0
    %309 = vmatpush1.bf16.msra.mxu0 0
    %310 = vmatprep.subr.bf16.mxu0 0
    %311 = vmatpush1.bf16.msra.mxu0 0
    %312 = vmatprep.subr.bf16.mxu0 0
    %313 = vmatpush1.bf16.msra.mxu0 0
    %314 = vmatprep.subr.bf16.mxu0 0
    %315 = vmatpush1.bf16.msra.mxu0 0
    %316 = vmatprep.mubr.bf16.mxu0 0
    %317 = vmatmul.mubr.bf16.gmra.mrb[0].mxu0 %v282
    %v318 = vpop.f32.mrb[0].mxu0
    %v319 = vadd.f32 0.0, %v318
    %v320 = vpop.f32.mrb[0].mxu0
    %v321 = vpop.f32.mrb[0].mxu0
    %v322 = vadd.f32 0.0, %v321
    %v323 = vpop.f32.mrb[0].mxu0
    %324 = vdwg.mxu0
    %v325 = vpack.c.bf16 %v271, %v268
    %v326 = vld [vmem:[#allocation8] sm:$0xf]
    %v327 = vld [vmem:[#allocation8 + $0x4] sm:$0xf]
    %v328 = vld [vmem:[#allocation8 + $0x8] sm:$0xf]
    %v329 = vld [vmem:[#allocation8 + $0xc] sm:$0xf]
    %v330 = vld [vmem:[#allocation8 + $0x10] sm:$0xf]
    %v331 = vld [vmem:[#allocation8 + $0x14] sm:$0xf]
    %v332 = vld [vmem:[#allocation8 + $0x18] sm:$0xf]
    %v333 = vld [vmem:[#allocation8 + $0x1c] sm:$0xf]
    %v334 = vld [vmem:[#allocation8 + $0x20] sm:$0xf]
    %v335 = vld [vmem:[#allocation8 + $0x24] sm:$0xf]
    %v336 = vld [vmem:[#allocation8 + $0x28] sm:$0xf]
    %v337 = vld [vmem:[#allocation8 + $0x2c] sm:$0xf]
    %v338 = vld [vmem:[#allocation8 + $0x30] sm:$0xf]
    %v339 = vld [vmem:[#allocation8 + $0x34] sm:$0xf]
    %v340 = vld [vmem:[#allocation8 + $0x38] sm:$0xf]
    %v341 = vld [vmem:[#allocation8 + $0x3c] sm:$0xf]
    %v358 = vunpack.c.l.b16 %v326
    %v359 = vunpack.c.l.b16 %v327
    %v360 = vunpack.c.l.b16 %v328
    %v361 = vunpack.c.l.b16 %v329
    %v362 = vunpack.c.l.b16 %v330
    %v363 = vunpack.c.l.b16 %v331
    %v364 = vunpack.c.l.b16 %v332
    %v365 = vunpack.c.l.b16 %v333
    %v366 = vunpack.c.l.b16 %v334
    %v367 = vunpack.c.l.b16 %v335
    %v368 = vunpack.c.l.b16 %v336
    %v369 = vunpack.c.l.b16 %v337
    %v370 = vunpack.c.l.b16 %v338
    %v371 = vunpack.c.l.b16 %v339
    %v372 = vunpack.c.l.b16 %v340
    %v373 = vunpack.c.l.b16 %v341
    %v374 = vpack.c.b16 %v359, %v358
    %v375 = vpack.c.b16 %v361, %v360
    %v376 = vpack.c.b16 %v363, %v362
    %v377 = vpack.c.b16 %v365, %v364
    %v378 = vpack.c.b16 %v367, %v366
    %v379 = vpack.c.b16 %v369, %v368
    %v380 = vpack.c.b16 %v371, %v370
    %v381 = vpack.c.b16 %v373, %v372
    %390 = vmatprep.subr.bf16.mxu0 0
    %391 = vmatpush1.bf16.msra.mxu0 %v374
    %392 = vmatprep.subr.bf16.mxu0 0
    %393 = vmatpush1.bf16.msra.mxu0 %v375
    %394 = vmatprep.subr.bf16.mxu0 0
    %395 = vmatpush1.bf16.msra.mxu0 %v376
    %396 = vmatprep.subr.bf16.mxu0 0
    %397 = vmatpush1.bf16.msra.mxu0 %v377
    %398 = vmatprep.subr.bf16.mxu0 0
    %399 = vmatpush1.bf16.msra.mxu0 %v378
    %400 = vmatprep.subr.bf16.mxu0 0
    %401 = vmatpush1.bf16.msra.mxu0 %v379
    %402 = vmatprep.subr.bf16.mxu0 0
    %403 = vmatpush1.bf16.msra.mxu0 %v380
    %404 = vmatprep.subr.bf16.mxu0 0
    %405 = vmatpush1.bf16.msra.mxu0 %v381
    %406 = vmatprep.subr.bf16.mxu0 0
    %407 = vmatpush1.bf16.msra.mxu0 0
    %408 = vmatprep.subr.bf16.mxu0 0
    %409 = vmatpush1.bf16.msra.mxu0 0
    %410 = vmatprep.subr.bf16.mxu0 0
    %411 = vmatpush1.bf16.msra.mxu0 0
    %412 = vmatprep.subr.bf16.mxu0 0
    %413 = vmatpush1.bf16.msra.mxu0 0
    %414 = vmatprep.subr.bf16.mxu0 0
    %415 = vmatpush1.bf16.msra.mxu0 0
    %416 = vmatprep.subr.bf16.mxu0 0
    %417 = vmatpush1.bf16.msra.mxu0 0
    %418 = vmatprep.subr.bf16.mxu0 0
    %419 = vmatpush1.bf16.msra.mxu0 0
    %420 = vmatprep.subr.bf16.mxu0 0
    %421 = vmatpush1.bf16.msra.mxu0 0
    %422 = vmatprep.mubr.bf16.mxu0 0
    %423 = vmatmul.mubr.bf16.gmra.mrb[0].mxu0 %v325
    %v424 = vpop.f32.mrb[0].mxu0
    %v425 = vadd.f32 0.0, %v424
    %v426 = vpop.f32.mrb[0].mxu0
    %v427 = vpop.f32.mrb[0].mxu0
    %v428 = vadd.f32 0.0, %v427
    %v429 = vpop.f32.mrb[0].mxu0
    %430 = vdwg.mxu0
    %v431 = vpack.c.bf16 %v322, %v319
    %v432 = vld [vmem:[#allocation10] sm:$0xf]
    %v433 = vld [vmem:[#allocation10 + $0x4] sm:$0xf]
    %v434 = vld [vmem:[#allocation10 + $0x8] sm:$0xf]
    %v435 = vld [vmem:[#allocation10 + $0xc] sm:$0xf]
    %v436 = vld [vmem:[#allocation10 + $0x10] sm:$0xf]
    %v437 = vld [vmem:[#allocation10 + $0x14] sm:$0xf]
    %v438 = vld [vmem:[#allocation10 + $0x18] sm:$0xf]
    %v439 = vld [vmem:[#allocation10 + $0x1c] sm:$0xf]
    %v440 = vld [vmem:[#allocation10 + $0x20] sm:$0xf]
    %v441 = vld [vmem:[#allocation10 + $0x24] sm:$0xf]
    %v442 = vld [vmem:[#allocation10 + $0x28] sm:$0xf]
    %v443 = vld [vmem:[#allocation10 + $0x2c] sm:$0xf]
    %v444 = vld [vmem:[#allocation10 + $0x30] sm:$0xf]
    %v445 = vld [vmem:[#allocation10 + $0x34] sm:$0xf]
    %v446 = vld [vmem:[#allocation10 + $0x38] sm:$0xf]
    %v447 = vld [vmem:[#allocation10 + $0x3c] sm:$0xf]
    %v464 = vunpack.c.l.b16 %v432
    %v465 = vunpack.c.l.b16 %v433
    %v466 = vunpack.c.l.b16 %v434
    %v467 = vunpack.c.l.b16 %v435
    %v468 = vunpack.c.l.b16 %v436
    %v469 = vunpack.c.l.b16 %v437
    %v470 = vunpack.c.l.b16 %v438
    %v471 = vunpack.c.l.b16 %v439
    %v472 = vunpack.c.l.b16 %v440
    %v473 = vunpack.c.l.b16 %v441
    %v474 = vunpack.c.l.b16 %v442
    %v475 = vunpack.c.l.b16 %v443
    %v476 = vunpack.c.l.b16 %v444
    %v477 = vunpack.c.l.b16 %v445
    %v478 = vunpack.c.l.b16 %v446
    %v479 = vunpack.c.l.b16 %v447
    %v480 = vpack.c.b16 %v465, %v464
    %v481 = vpack.c.b16 %v467, %v466
    %v482 = vpack.c.b16 %v469, %v468
    %v483 = vpack.c.b16 %v471, %v470
    %v484 = vpack.c.b16 %v473, %v472
    %v485 = vpack.c.b16 %v475, %v474
    %v486 = vpack.c.b16 %v477, %v476
    %v487 = vpack.c.b16 %v479, %v478
    %496 = vmatprep.subr.bf16.mxu0 0
    %497 = vmatpush1.bf16.msra.mxu0 %v480
    %498 = vmatprep.subr.bf16.mxu0 0
    %499 = vmatpush1.bf16.msra.mxu0 %v481
    %500 = vmatprep.subr.bf16.mxu0 0
    %501 = vmatpush1.bf16.msra.mxu0 %v482
    %502 = vmatprep.subr.bf16.mxu0 0
    %503 = vmatpush1.bf16.msra.mxu0 %v483
    %504 = vmatprep.subr.bf16.mxu0 0
    %505 = vmatpush1.bf16.msra.mxu0 %v484
    %506 = vmatprep.subr.bf16.mxu0 0
    %507 = vmatpush1.bf16.msra.mxu0 %v485
    %508 = vmatprep.subr.bf16.mxu0 0
    %509 = vmatpush1.bf16.msra.mxu0 %v486
    %510 = vmatprep.subr.bf16.mxu0 0
    %511 = vmatpush1.bf16.msra.mxu0 %v487
    %512 = vmatprep.subr.bf16.mxu0 0
    %513 = vmatpush1.bf16.msra.mxu0 0
    %514 = vmatprep.subr.bf16.mxu0 0
    %515 = vmatpush1.bf16.msra.mxu0 0
    %516 = vmatprep.subr.bf16.mxu0 0
    %517 = vmatpush1.bf16.msra.mxu0 0
    %518 = vmatprep.subr.bf16.mxu0 0
    %519 = vmatpush1.bf16.msra.mxu0 0
    %520 = vmatprep.subr.bf16.mxu0 0
    %521 = vmatpush1.bf16.msra.mxu0 0
    %522 = vmatprep.subr.bf16.mxu0 0
    %523 = vmatpush1.bf16.msra.mxu0 0
    %524 = vmatprep.subr.bf16.mxu0 0
    %525 = vmatpush1.bf16.msra.mxu0 0
    %526 = vmatprep.subr.bf16.mxu0 0
    %527 = vmatpush1.bf16.msra.mxu0 0
    %528 = vmatprep.mubr.bf16.mxu0 0
    %529 = vmatmul.mubr.bf16.gmra.mrb[0].mxu0 %v431
    %v530 = vpop.f32.mrb[0].mxu0
    %v531 = vadd.f32 0.0, %v530
    %v532 = vpop.f32.mrb[0].mxu0
    %v533 = vpop.f32.mrb[0].mxu0
    %v534 = vadd.f32 0.0, %v533
    %v535 = vpop.f32.mrb[0].mxu0
    %536 = vdwg.mxu0
    %v537 = vsub.f32 %v425, %v531
    %v538 = vsub.f32 %v428, %v534
    %v539 = vadd.f32 %v537, %v142
    %v540 = vadd.f32 %v538, %v143
    %v541 = vld [vmem:[%s7] sm:$0x1]
    %v542 = vld [vmem:[%s8] sm:$0x1]
    %543 = vadd.xlane.f32.xlu0 %v539
    %v544 = vpop.xlane.xlu0 %543
    %545 = vadd.xlane.f32.xlu0 %v540
    %v546 = vpop.xlane.xlu0 %545
    %v547 = vmul.f32 %v544, %v150
    %v548 = vmul.f32 %v546, %v150
    %v549 = vsub.f32 %v539, %v547
    %v550 = vsub.f32 %v540, %v548
    %v551 = vmul.f32 %v549, %v549
    %v552 = vmul.f32 %v550, %v550
    %553 = vadd.xlane.f32.xlu0 %v551
    %v554 = vpop.xlane.xlu0 %553
    %555 = vadd.xlane.f32.xlu0 %v552
    %v556 = vpop.xlane.xlu0 %555
    %v557 = vmul.f32 %v554, %v150
    %v558 = vmul.f32 %v556, %v150
    %v559 = vadd.f32 %v557, 1e-05
    %v560 = vadd.f32 %v558, 1e-05
    %v561 = vrsqrt.pop %v559
    %v562 = vrsqrt.pop %v560
    %v563 = vmul.f32 %v549, %v561
    %v564 = vmul.f32 %v550, %v562
    %v566 = vlaneseq
    %v567 = vshrl.u32 %v566, 7
    %v568 = vsub.s32 0, %v567
    %v569 = vrot.slane %v541, %v568
    %v571 = vmul.f32 %v563, %v569
    %v572 = vmul.f32 %v564, %v569
    %v574 = vlaneseq
    %v575 = vshrl.u32 %v574, 7
    %v576 = vsub.s32 0, %v575
    %v577 = vrot.slane %v542, %v576
    %v579 = vadd.f32 %v571, %v577
    %v580 = vadd.f32 %v572, %v577
    %v581 = vpack.c.bf16 %v580, %v579
    %v582 = vld [vmem:[#allocation11] sm:$0xff]
    %v583 = vld [vmem:[#allocation11 + $0x8] sm:$0xff]
    %v584 = vld [vmem:[#allocation11 + $0x10] sm:$0xff]
    %v585 = vld [vmem:[#allocation11 + $0x18] sm:$0xff]
    %v586 = vld [vmem:[#allocation11 + $0x20] sm:$0xff]
    %v587 = vld [vmem:[#allocation11 + $0x28] sm:$0xff]
    %v588 = vld [vmem:[#allocation11 + $0x30] sm:$0xff]
    %v589 = vld [vmem:[#allocation11 + $0x38] sm:$0xff]
    %v590 = vld [vmem:[#allocation11 + $0x40] sm:$0xff]
    %v591 = vld [vmem:[#allocation11 + $0x48] sm:$0xff]
    %v592 = vld [vmem:[#allocation11 + $0x50] sm:$0xff]
    %v593 = vld [vmem:[#allocation11 + $0x58] sm:$0xff]
    %v594 = vld [vmem:[#allocation11 + $0x60] sm:$0xff]
    %v595 = vld [vmem:[#allocation11 + $0x68] sm:$0xff]
    %v596 = vld [vmem:[#allocation11 + $0x70] sm:$0xff]
    %v597 = vld [vmem:[#allocation11 + $0x78] sm:$0xff]
    %v598 = vld [vmem:[%s10] sm:$0x3]
    %v600 = vlaneseq
    %v601 = vshrl.u32 %v600, 7
    %v602 = vsub.s32 0, %v601
    %v603 = vrot.slane %v598, %v602
    %v604 = vlaneseq
    %v605 = vshrl.u32 %v604, 7
    %v606 = vsub.s32 1, %v605
    %v607 = vrot.slane %v598, %v606
    %v626 = vunpack.c.l.b16 %v582
    %v627 = vunpack.c.h.b16 %v582
    %v628 = vunpack.c.l.b16 %v583
    %v629 = vunpack.c.h.b16 %v583
    %v630 = vunpack.c.l.b16 %v584
    %v631 = vunpack.c.h.b16 %v584
    %v632 = vunpack.c.l.b16 %v585
    %v633 = vunpack.c.h.b16 %v585
    %v634 = vunpack.c.l.b16 %v586
    %v635 = vunpack.c.h.b16 %v586
    %v636 = vunpack.c.l.b16 %v587
    %v637 = vunpack.c.h.b16 %v587
    %v638 = vunpack.c.l.b16 %v588
    %v639 = vunpack.c.h.b16 %v588
    %v640 = vunpack.c.l.b16 %v589
    %v641 = vunpack.c.h.b16 %v589
    %v642 = vunpack.c.l.b16 %v590
    %v643 = vunpack.c.h.b16 %v590
    %v644 = vunpack.c.l.b16 %v591
    %v645 = vunpack.c.h.b16 %v591
    %v646 = vunpack.c.l.b16 %v592
    %v647 = vunpack.c.h.b16 %v592
    %v648 = vunpack.c.l.b16 %v593
    %v649 = vunpack.c.h.b16 %v593
    %v650 = vunpack.c.l.b16 %v594
    %v651 = vunpack.c.h.b16 %v594
    %v652 = vunpack.c.l.b16 %v595
    %v653 = vunpack.c.h.b16 %v595
    %v654 = vunpack.c.l.b16 %v596
    %v655 = vunpack.c.h.b16 %v596
    %v656 = vunpack.c.l.b16 %v597
    %v657 = vunpack.c.h.b16 %v597
    %v658 = vpack.c.b16 %v628, %v626
    %v659 = vpack.c.b16 %v629, %v627
    %v660 = vpack.c.b16 %v632, %v630
    %v661 = vpack.c.b16 %v633, %v631
    %v662 = vpack.c.b16 %v636, %v634
    %v663 = vpack.c.b16 %v637, %v635
    %v664 = vpack.c.b16 %v640, %v638
    %v665 = vpack.c.b16 %v641, %v639
    %v666 = vpack.c.b16 %v644, %v642
    %v667 = vpack.c.b16 %v645, %v643
    %v668 = vpack.c.b16 %v648, %v646
    %v669 = vpack.c.b16 %v649, %v647
    %v670 = vpack.c.b16 %v652, %v650
    %v671 = vpack.c.b16 %v653, %v651
    %v672 = vpack.c.b16 %v656, %v654
    %v673 = vpack.c.b16 %v657, %v655
    %690 = vmatprep.subr.bf16.mxu0 %v659
    %691 = vmatpush1.bf16.msra.mxu0 %v658
    %692 = vmatprep.subr.bf16.mxu0 %v661
    %693 = vmatpush1.bf16.msra.mxu0 %v660
    %694 = vmatprep.subr.bf16.mxu0 %v663
    %695 = vmatpush1.bf16.msra.mxu0 %v662
    %696 = vmatprep.subr.bf16.mxu0 %v665
    %697 = vmatpush1.bf16.msra.mxu0 %v664
    %698 = vmatprep.subr.bf16.mxu0 %v667
    %699 = vmatpush1.bf16.msra.mxu0 %v666
    %700 = vmatprep.subr.bf16.mxu0 %v669
    %701 = vmatpush1.bf16.msra.mxu0 %v668
    %702 = vmatprep.subr.bf16.mxu0 %v671
    %703 = vmatpush1.bf16.msra.mxu0 %v670
    %704 = vmatprep.subr.bf16.mxu0 %v673
    %705 = vmatpush1.bf16.msra.mxu0 %v672
    %706 = vmatprep.subr.bf16.mxu0 0
    %707 = vmatpush1.bf16.msra.mxu0 0
    %708 = vmatprep.subr.bf16.mxu0 0
    %709 = vmatpush1.bf16.msra.mxu0 0
    %710 = vmatprep.subr.bf16.mxu0 0
    %711 = vmatpush1.bf16.msra.mxu0 0
    %712 = vmatprep.subr.bf16.mxu0 0
    %713 = vmatpush1.bf16.msra.mxu0 0
    %714 = vmatprep.subr.bf16.mxu0 0
    %715 = vmatpush1.bf16.msra.mxu0 0
    %716 = vmatprep.subr.bf16.mxu0 0
    %717 = vmatpush1.bf16.msra.mxu0 0
    %718 = vmatprep.subr.bf16.mxu0 0
    %719 = vmatpush1.bf16.msra.mxu0 0
    %720 = vmatprep.subr.bf16.mxu0 0
    %721 = vmatpush1.bf16.msra.mxu0 0
    %722 = vmatprep.mubr.bf16.mxu0 0
    %723 = vmatmul.mubr.bf16.gmra.mrb[0].mxu0 %v581
    %v724 = vpop.f32.mrb[0].mxu0
    %v725 = vadd.f32 %v603, %v724
    %v726 = vpop.f32.mrb[0].mxu0
    %v727 = vadd.f32 %v607, %v726
    %v728 = vpop.f32.mrb[0].mxu0
    %v729 = vadd.f32 %v603, %v728
    %v730 = vpop.f32.mrb[0].mxu0
    %v731 = vadd.f32 %v607, %v730
    %732 = vdwg.mxu0
    %v733 = vmul.f32 %v725, 0.5
    %v734 = vmul.f32 %v727, 0.5
    %v735 = vmul.f32 %v729, 0.5
    %v736 = vmul.f32 %v731, 0.5
    %v737 = vmul.f32 %v725, 0.044715
    %v738 = vmul.f32 %v727, 0.044715
    %v739 = vmul.f32 %v729, 0.044715
    %v740 = vmul.f32 %v731, 0.044715
    %v741 = vmul.f32 %v737, %v725
    %v742 = vmul.f32 %v738, %v727
    %v743 = vmul.f32 %v739, %v729
    %v744 = vmul.f32 %v740, %v731
    %v745 = vmul.f32 %v741, %v725
    %v746 = vmul.f32 %v742, %v727
    %v747 = vmul.f32 %v743, %v729
    %v748 = vmul.f32 %v744, %v731
    %v749 = vadd.f32 %v725, %v745
    %v750 = vadd.f32 %v727, %v746
    %v751 = vadd.f32 %v729, %v747
    %v752 = vadd.f32 %v731, %v748
    %v753 = vmul.f32 %v749, 0.7978846
    %v754 = vmul.f32 %v750, 0.7978846
    %v755 = vmul.f32 %v751, 0.7978846
    %v756 = vmul.f32 %v752, 0.7978846
    %v757 = vtanh.pop %v753
    %v758 = vtanh.pop %v754
    %v759 = vtanh.pop %v755
    %v760 = vtanh.pop %v756
    %v761 = vadd.f32 %v757, 1.0
    %v762 = vadd.f32 %v758, 1.0
    %v763 = vadd.f32 %v759, 1.0
    %v764 = vadd.f32 %v760, 1.0
    %v765 = vmul.f32 %v733, %v761
    %v766 = vmul.f32 %v734, %v762
    %v767 = vmul.f32 %v735, %v763
    %v768 = vmul.f32 %v736, %v764
    %v769 = vpack.c.bf16 %v767, %v765
    %v770 = vpack.c.bf16 %v768, %v766
    %v771 = vld [vmem:[#allocation13] sm:$0xf]
    %v772 = vld [vmem:[#allocation13 + $0x4] sm:$0xf]
    %v773 = vld [vmem:[#allocation13 + $0x8] sm:$0xf]
    %v774 = vld [vmem:[#allocation13 + $0xc] sm:$0xf]
    %v775 = vld [vmem:[#allocation13 + $0x10] sm:$0xf]
    %v776 = vld [vmem:[#allocation13 + $0x14] sm:$0xf]
    %v777 = vld [vmem:[#allocation13 + $0x18] sm:$0xf]
    %v778 = vld [vmem:[#allocation13 + $0x1c] sm:$0xf]
    %v779 = vld [vmem:[#allocation13 + $0x20] sm:$0xf]
    %v780 = vld [vmem:[#allocation13 + $0x24] sm:$0xf]
    %v781 = vld [vmem:[#allocation13 + $0x28] sm:$0xf]
    %v782 = vld [vmem:[#allocation13 + $0x2c] sm:$0xf]
    %v783 = vld [vmem:[#allocation13 + $0x30] sm:$0xf]
    %v784 = vld [vmem:[#allocation13 + $0x34] sm:$0xf]
    %v785 = vld [vmem:[#allocation13 + $0x38] sm:$0xf]
    %v786 = vld [vmem:[#allocation13 + $0x3c] sm:$0xf]
    %v787 = vld [vmem:[#allocation13 + $0x40] sm:$0xf]
    %v788 = vld [vmem:[#allocation13 + $0x44] sm:$0xf]
    %v789 = vld [vmem:[#allocation13 + $0x48] sm:$0xf]
    %v790 = vld [vmem:[#allocation13 + $0x4c] sm:$0xf]
    %v791 = vld [vmem:[#allocation13 + $0x50] sm:$0xf]
    %v792 = vld [vmem:[#allocation13 + $0x54] sm:$0xf]
    %v793 = vld [vmem:[#allocation13 + $0x58] sm:$0xf]
    %v794 = vld [vmem:[#allocation13 + $0x5c] sm:$0xf]
    %v795 = vld [vmem:[#allocation13 + $0x60] sm:$0xf]
    %v796 = vld [vmem:[#allocation13 + $0x64] sm:$0xf]
    %v797 = vld [vmem:[#allocation13 + $0x68] sm:$0xf]
    %v798 = vld [vmem:[#allocation13 + $0x6c] sm:$0xf]
    %v799 = vld [vmem:[#allocation13 + $0x70] sm:$0xf]
    %v800 = vld [vmem:[#allocation13 + $0x74] sm:$0xf]
    %v801 = vld [vmem:[#allocation13 + $0x78] sm:$0xf]
    %v802 = vld [vmem:[#allocation13 + $0x7c] sm:$0xf]
    %v803 = vld [vmem:[%s12] sm:$0x1]
    %v805 = vlaneseq
    %v806 = vshrl.u32 %v805, 7
    %v807 = vsub.s32 0, %v806
    %v808 = vrot.slane %v803, %v807
    %v842 = vunpack.c.l.b16 %v771
    %v843 = vunpack.c.l.b16 %v772
    %v844 = vunpack.c.l.b16 %v773
    %v845 = vunpack.c.l.b16 %v774
    %v846 = vunpack.c.l.b16 %v775
    %v847 = vunpack.c.l.b16 %v776
    %v848 = vunpack.c.l.b16 %v777
    %v849 = vunpack.c.l.b16 %v778
    %v850 = vunpack.c.l.b16 %v779
    %v851 = vunpack.c.l.b16 %v780
    %v852 = vunpack.c.l.b16 %v781
    %v853 = vunpack.c.l.b16 %v782
    %v854 = vunpack.c.l.b16 %v783
    %v855 = vunpack.c.l.b16 %v784
    %v856 = vunpack.c.l.b16 %v785
    %v857 = vunpack.c.l.b16 %v786
    %v858 = vunpack.c.l.b16 %v787
    %v859 = vunpack.c.l.b16 %v788
    %v860 = vunpack.c.l.b16 %v789
    %v861 = vunpack.c.l.b16 %v790
    %v862 = vunpack.c.l.b16 %v791
    %v863 = vunpack.c.l.b16 %v792
    %v864 = vunpack.c.l.b16 %v793
    %v865 = vunpack.c.l.b16 %v794
    %v866 = vunpack.c.l.b16 %v795
    %v867 = vunpack.c.l.b16 %v796
    %v868 = vunpack.c.l.b16 %v797
    %v869 = vunpack.c.l.b16 %v798
    %v870 = vunpack.c.l.b16 %v799
    %v871 = vunpack.c.l.b16 %v800
    %v872 = vunpack.c.l.b16 %v801
    %v873 = vunpack.c.l.b16 %v802
    %v874 = vpack.c.b16 %v843, %v842
    %v875 = vpack.c.b16 %v845, %v844
    %v876 = vpack.c.b16 %v847, %v846
    %v877 = vpack.c.b16 %v849, %v848
    %v878 = vpack.c.b16 %v851, %v850
    %v879 = vpack.c.b16 %v853, %v852
    %v880 = vpack.c.b16 %v855, %v854
    %v881 = vpack.c.b16 %v857, %v856
    %v882 = vpack.c.b16 %v859, %v858
    %v883 = vpack.c.b16 %v861, %v860
    %v884 = vpack.c.b16 %v863, %v862
    %v885 = vpack.c.b16 %v865, %v864
    %v886 = vpack.c.b16 %v867, %v866
    %v887 = vpack.c.b16 %v869, %v868
    %v888 = vpack.c.b16 %v871, %v870
    %v889 = vpack.c.b16 %v873, %v872
    %906 = vmatprep.subr.bf16.mxu0 0
    %907 = vmatpush1.bf16.msra.mxu0 %v874
    %908 = vmatprep.subr.bf16.mxu0 0
    %909 = vmatpush1.bf16.msra.mxu0 %v875
    %910 = vmatprep.subr.bf16.mxu0 0
    %911 = vmatpush1.bf16.msra.mxu0 %v876
    %912 = vmatprep.subr.bf16.mxu0 0
    %913 = vmatpush1.bf16.msra.mxu0 %v877
    %914 = vmatprep.subr.bf16.mxu0 0
    %915 = vmatpush1.bf16.msra.mxu0 %v878
    %916 = vmatprep.subr.bf16.mxu0 0
    %917 = vmatpush1.bf16.msra.mxu0 %v879
    %918 = vmatprep.subr.bf16.mxu0 0
    %919 = vmatpush1.bf16.msra.mxu0 %v880
    %920 = vmatprep.subr.bf16.mxu0 0
    %921 = vmatpush1.bf16.msra.mxu0 %v881
    %922 = vmatprep.subr.bf16.mxu0 0
    %923 = vmatpush1.bf16.msra.mxu0 %v882
    %924 = vmatprep.subr.bf16.mxu0 0
    %925 = vmatpush1.bf16.msra.mxu0 %v883
    %926 = vmatprep.subr.bf16.mxu0 0
    %927 = vmatpush1.bf16.msra.mxu0 %v884
    %928 = vmatprep.subr.bf16.mxu0 0
    %929 = vmatpush1.bf16.msra.mxu0 %v885
    %930 = vmatprep.subr.bf16.mxu0 0
    %931 = vmatpush1.bf16.msra.mxu0 %v886
    %932 = vmatprep.subr.bf16.mxu0 0
    %933 = vmatpush1.bf16.msra.mxu0 %v887
    %934 = vmatprep.subr.bf16.mxu0 0
    %935 = vmatpush1.bf16.msra.mxu0 %v888
    %936 = vmatprep.subr.bf16.mxu0 0
    %937 = vmatpush1.bf16.msra.mxu0 %v889
    %938 = vmatprep.mubr.bf16.mxu0 %v770
    %939 = vmatmul.mubr.bf16.gmra.mrb[0].mxu0 %v769
    %v940 = vpop.f32.mrb[0].mxu0
    %v941 = vadd.f32 %v808, %v940
    %v942 = vpop.f32.mrb[0].mxu0
    %v943 = vpop.f32.mrb[0].mxu0
    %v944 = vadd.f32 %v808, %v943
    %v945 = vpop.f32.mrb[0].mxu0
    %946 = vdwg.mxu0
    %v947 = vadd.f32 %v941, %v539
    %v948 = vadd.f32 %v944, %v540
    %949 = vst [vmem:[#allocation14] sm:$0xff] %v947
    %950 = vst [vmem:[#allocation14 + $0x8] sm:$0xff] %v948
    // Predicated region
    $region82: #{tpu_custom_call.1} parent=1 // pred_check
      _
    $region83: #{tpu_custom_call.1} parent=1 // pred_check_branch
      %952 = sbr.rel (0) target = $region85
    $region84: #{tpu_custom_call.1} parent=1 // pred_region
      %s954 = ssub.s32 256, 256
      %955 = vsyncadd [#allocation4], %s954
      %s956 = sshll.u32 [#allocation14], 4
      %s957 = int_to_ptr.vmem [resolvable:$true] %s956
      %962 = dma.vmem_to_hbm [thread:$0]  %s957, 256, %s13, [#allocation4], 128, 128, 8
    $region85: #{tpu_custom_call.1} parent=1 // pred_fallthru
      _
    // Predicated region
    $region86: #{tpu_custom_call.1} parent=1 // pred_check
      _
    $region87: #{tpu_custom_call.1} parent=1 // pred_check_branch
      %964 = sbr.rel (0) target = $region89
    $region88: #{tpu_custom_call.1} parent=1 // pred_region
      %s966 = ssub.s32 256, 256
      %967 = vsyncadd [#allocation16], %s966
      %s968 = sshll.u32 [#allocation15], 4
      %s969 = int_to_ptr.vmem [resolvable:$true] %s968
      %974 = dma.vmem_to_hbm [thread:$0]  %s969, 256, %s14, [#allocation16], 128, 128, 8
    $region89: #{tpu_custom_call.1} parent=1 // pred_fallthru
      _
    // Predicated region
    $region90: #{tpu_custom_call.1} parent=1 // pred_check
      _
    $region91: #{tpu_custom_call.1} parent=1 // pred_check_branch
      %976 = sbr.rel (0) target = $region93
    $region92: #{tpu_custom_call.1} parent=1 // pred_region
      %977 = dma.done [#allocation4], 256
    $region93: #{tpu_custom_call.1} parent=1 // pred_fallthru
      _
    // Predicated region
    $region94: #{tpu_custom_call.1} parent=1 // pred_check
      _
    $region95: #{tpu_custom_call.1} parent=1 // pred_check_branch
      %979 = sbr.rel (0) target = $region97
    $region96: #{tpu_custom_call.1} parent=1 // pred_region
      %980 = dma.done [#allocation16], 256
    $region97: #{tpu_custom_call.1} parent=1 // pred_fallthru
      _
    %981 = vsyncpa [#allocation3], 1
    %982 = vsyncpa [#allocation6], 1
    %983 = vsyncpa [#allocation9], 1
    %984 = vsyncpa [#allocation12], 1
    %985 = vsyncpa [#allocation4], 1
    %986 = vsyncpa [#allocation16], 1

</llo_original>
